<compile_context>
chip_gen: v5e
topology: v5e:2x2
jax: 0.10.0
libtpu: 0.0.40
codegen_flags: <defaults>
</compile_context>

<pallas_src>
import functools

import jax
import jax.numpy as jnp
from jax.experimental import pallas as pl
from jax.experimental.pallas import tpu as pltpu

HIDDEN = 32      # fc1 / fc2 width
OUT = 48         # fc3 width
PAD = 128        # lane-dense padded feature width
BN_EPS = 1e-5


# --------------------------------------------------------------------------
# Kernel
# --------------------------------------------------------------------------
def pose_decoder_kernel(x_ref, w_ref, o_ref, h_ref, *, latent):
    """Fused (fc1+BN1+lrelu) -> (fc2+BN2+lrelu) -> fc3, biases via ones-lane.

    x_ref : (TB, latent)    raw activations, float32
    w_ref : (3, 128, 128)   folded weights + biases (compute dtype)
    o_ref : (TB, 128)       lane-dense padded output
    h_ref : (TB, 128)       VMEM scratch (compute dtype)
    """
    cdt = h_ref.dtype

    # Build the padded activation row [x, 1, 0, ..., 0].  The constant-1 lane
    # at column `latent` carries the folded layer-1 bias; the packed weights
    # keep a 1.0 on the ones-lane "diagonal" so the lane survives layers 1/2
    # (LeakyReLU(1) == 1) and carries c2 / c3.
    # Rebuilt every grid step: scratch is per-core, and guarding the init on
    # program_id == 0 would break when the parallel axis is core-split.
    col = jax.lax.broadcasted_iota(jnp.int32, h_ref.shape, dimension=1)
    h_ref[...] = (col == latent).astype(cdt)
    h_ref[:, :latent] = x_ref[...].astype(cdt)

    # Layer 1: fc1 + folded BatchNorm1d, LeakyReLU(0.2).  Dropout = identity.
    a = jnp.dot(h_ref[...], w_ref[0], preferred_element_type=jnp.float32)
    a = jnp.maximum(a, 0.2 * a)          # == where(a>0, a, 0.2a); slope in (0,1)

    # Layer 2: fc2 + folded BatchNorm1d, LeakyReLU(0.2).  Dropout = identity.
    a = jnp.dot(a.astype(cdt), w_ref[1], preferred_element_type=jnp.float32)
    a = jnp.maximum(a, 0.2 * a)

    # Layer 3: fc3 (no BN / activation).
    o = jnp.dot(a.astype(cdt), w_ref[2], preferred_element_type=jnp.float32)
    o_ref[...] = o.astype(o_ref.dtype)


# --------------------------------------------------------------------------
# One-time (model-load) parameter folding / packing
# --------------------------------------------------------------------------
def fold_and_pack_params(params, compute_dtype=jnp.bfloat16):
    """Fold eval-mode BN + ALL biases into one stacked (3,128,128) operand.

    Call this ONCE at model-load time and reuse the result for every forward
    call (this is the cached-weights path requested by the perf review).
    """
    latent = params["w1"].shape[0]
    assert latent < PAD, f"latent={latent} must be < {PAD} (ones lane needs a slot)"

    s1 = params["bn1_gamma"] / jnp.sqrt(params["bn1_var"] + BN_EPS)
    t1 = params["bn1_beta"] - params["bn1_mean"] * s1
    s2 = params["bn2_gamma"] / jnp.sqrt(params["bn2_var"] + BN_EPS)
    t2 = params["bn2_beta"] - params["bn2_mean"] * s2

    w1 = params["w1"] * s1[None, :]          # (latent, 32)
    w2 = params["w2"] * s2[None, :]          # (32, 32)
    w3 = params["w3"]                        # (32, 48)
    c1 = params["b1"] * s1 + t1
    c2 = params["b2"] * s2 + t2
    c3 = params["b3"]

    # Padded entries are exactly 0 so padded lanes stay 0 through LeakyReLU.
    W = jnp.zeros((3, PAD, PAD), jnp.float32)
    # Layer 1: weight rows, bias row at `latent`, ones-lane feed at HIDDEN.
    W = W.at[0, :latent, :HIDDEN].set(w1)
    W = W.at[0, latent, :HIDDEN].set(c1)
    W = W.at[0, latent, HIDDEN].set(1.0)
    # Layer 2.
    W = W.at[1, :HIDDEN, :HIDDEN].set(w2)
    W = W.at[1, HIDDEN, :HIDDEN].set(c2)
    W = W.at[1, HIDDEN, HIDDEN].set(1.0)
    # Layer 3.
    W = W.at[2, :HIDDEN, :OUT].set(w3)
    W = W.at[2, HIDDEN, :OUT].set(c3)
    return W.astype(compute_dtype)


# --------------------------------------------------------------------------
# Forward
# --------------------------------------------------------------------------
def _round_up(n, m):
    return (n + m - 1) // m * m


def _choose_batch_tile(B, *, sublane=16, max_tile=2048, split_from=512):
    """Adaptive batch tile: multiple of 16 (bf16 sublane tile), capped at 2048;
    >= 2 tiles once B is large so both v7x TensorCores get work; sized so
    B_pad never nearly doubles B just past a tile boundary."""
    n_tiles = pl.cdiv(B, max_tile)
    if n_tiles < 2 and B >= split_from:
        n_tiles = 2
    return _round_up(pl.cdiv(B, n_tiles), sublane)


@functools.partial(jax.jit, static_argnames=("out_dtype",))
def pose_decoder_forward(x, W, out_dtype=jnp.bfloat16):
    """Eval-mode forward.

    x : (B, latent) float32 activations.
    W : packed (3, 128, 128) weights from fold_and_pack_params (precomputed
        once at model load; its dtype sets the matmul compute dtype).
    Returns (B, 48) in `out_dtype`.
    """
    B, latent = x.shape
    assert latent < PAD, f"latent={latent} must be < {PAD}"

    TB = _choose_batch_tile(B)
    B_pad = _round_up(B, TB)
    if B_pad != B:
        # Single tiny pad op on the narrow (B, latent) input (no (B,128) pass).
        x = jnp.pad(x, ((0, B_pad - B), (0, 0)))

    kernel = functools.partial(pose_decoder_kernel, latent=latent)
    out = pl.pallas_call(
        kernel,
        out_shape=jax.ShapeDtypeStruct((B_pad, PAD), out_dtype),
        grid=(B_pad // TB,),
        in_specs=[
            pl.BlockSpec((TB, latent), lambda i: (i, 0)),        # x: streamed per tile
            pl.BlockSpec((3, PAD, PAD), lambda i: (0, 0, 0)),    # weights: VMEM-resident
        ],
        out_specs=pl.BlockSpec((TB, PAD), lambda i: (i, 0)),     # lane-dense output
        scratch_shapes=[pltpu.VMEM((TB, PAD), W.dtype)],         # padded activation
        compiler_params=pltpu.CompilerParams(
            dimension_semantics=("parallel",)),
    )(x, W)

    return out[:B, :OUT]


# --------------------------------------------------------------------------
# Synthetic parameters + pure-JAX reference
# --------------------------------------------------------------------------
def init_params(key, latent=20, hidden=HIDDEN, out=OUT):
    """Deterministic synthetic parameters (PyTorch Linear stores (out,in);
    we keep the transposed (in,out) layout so the kernel does x @ W)."""
    ks = jax.random.split(key, 6)

    def unif(k, shape, fan_in):
        bound = 1.0 / jnp.sqrt(fan_in)
        return jax.random.uniform(k, shape, jnp.float32, -bound, bound)

    return {
        "w1": unif(ks[0], (latent, hidden), latent),
        "b1": unif(ks[1], (hidden,), latent),
        "w2": unif(ks[2], (hidden, hidden), hidden),
        "b2": unif(ks[3], (hidden,), hidden),
        "w3": unif(ks[4], (hidden, out), hidden),
        "b3": unif(ks[5], (out,), hidden),
        # BatchNorm1d(32) parameters / running stats (deterministic, non-trivial).
        "bn1_gamma": jnp.linspace(0.8, 1.2, hidden, dtype=jnp.float32),
        "bn1_beta":  jnp.linspace(-0.1, 0.1, hidden, dtype=jnp.float32),
        "bn1_mean":  jnp.linspace(-0.05, 0.05, hidden, dtype=jnp.float32),
        "bn1_var":   jnp.linspace(0.9, 1.1, hidden, dtype=jnp.float32),
        "bn2_gamma": jnp.linspace(1.1, 0.9, hidden, dtype=jnp.float32),
        "bn2_beta":  jnp.linspace(0.05, -0.05, hidden, dtype=jnp.float32),
        "bn2_mean":  jnp.linspace(0.02, -0.02, hidden, dtype=jnp.float32),
        "bn2_var":   jnp.linspace(1.05, 0.95, hidden, dtype=jnp.float32),
    }


def reference_forward(x, params):
    """Pure-JAX reference of the eval-mode PyTorch forward."""
    def lrelu(v):
        return jnp.where(v > 0, v, 0.2 * v)

    h = x @ params["w1"] + params["b1"]
    h = (h - params["bn1_mean"]) / jnp.sqrt(params["bn1_var"] + BN_EPS) \
        * params["bn1_gamma"] + params["bn1_beta"]
    h = lrelu(h)
    h = h @ params["w2"] + params["b2"]
    h = (h - params["bn2_mean"]) / jnp.sqrt(params["bn2_var"] + BN_EPS) \
        * params["bn2_gamma"] + params["bn2_beta"]
    h = lrelu(h)
    return h @ params["w3"] + params["b3"]


if __name__ == "__main__":
    key = jax.random.PRNGKey(0)
    k_x, k_p = jax.random.split(key)

    B, LATENT = 8, 20                       # small batch, module default latent=20
    x = jax.random.normal(k_x, (B, LATENT), dtype=jnp.float32)
    params = init_params(k_p, latent=LATENT)

    ref = reference_forward(x, params)

    # One-time ("model load") packing; cached and reused across forward calls.
    W_f32 = fold_and_pack_params(params, compute_dtype=jnp.float32)
    W_bf16 = fold_and_pack_params(params, compute_dtype=jnp.bfloat16)

    # f32 compute + f32 output: tight check against the unfolded reference.
    out_f32 = jax.block_until_ready(
        pose_decoder_forward(x, W_f32, out_dtype=jnp.float32))
    assert out_f32.shape == (B, OUT), out_f32.shape
    assert jnp.allclose(out_f32, ref, atol=1e-4, rtol=1e-4), "f32 kernel mismatch"

    # Default path: bf16 matmul operands + bf16 output (looser tolerance for
    # bf16 operand/output rounding).
    out_bf16 = jax.block_until_ready(pose_decoder_forward(x, W_bf16))
    assert out_bf16.shape == (B, OUT), out_bf16.shape
    assert jnp.allclose(out_bf16.astype(jnp.float32), ref,
                        atol=7.5e-2, rtol=5e-2), "bf16 kernel mismatch"

    print("KERNEL_OK")
</pallas_src>

<mosaic_0001>
module attributes {stable_mosaic.version = 11 : i64} {
  func.func @pose_decoder_kernel(%arg0: i32, %arg1: memref<16x20xf32, #tpu.memory_space<vmem>>, %arg2: memref<3x128x128xf32, #tpu.memory_space<vmem>>, %arg3: memref<16x128xf32, #tpu.memory_space<vmem>>, %arg4: memref<16x128xf32, #tpu.memory_space<vmem>>) attributes {dimension_semantics = [#tpu.dimension_semantics<parallel>], iteration_bounds = array<i64: 1>, scalar_prefetch = 0 : i64, scratch_operands = 1 : i64, tpu.core_type = #tpu.core_type<tc>, window_params = [{transform_indices = @transform_0, window_bounds = array<i64: 16, 20>}, {pipeline_mode = #tpu.pipeline_mode<synchronous>, transform_indices = @transform_1, window_bounds = array<i64: 3, 128, 128>}, {transform_indices = @transform_2, window_bounds = array<i64: 16, 128>}]} {
    %0 = tpu.iota {dimensions = array<i32: 1>} : vector<16x128xi32>
    %c20_i32 = arith.constant 20 : i32
    %1 = vector.broadcast %c20_i32 : i32 to vector<16x128xi32>
    %2 = arith.cmpi eq, %0, %1 : vector<16x128xi32>
    %3 = arith.extui %2 : vector<16x128xi1> to vector<16x128xi32>
    %4 = arith.sitofp %3 : vector<16x128xi32> to vector<16x128xf32>
    %c0 = arith.constant 0 : index
    %c0_0 = arith.constant 0 : index
    %5 = vector.load %arg4[%c0, %c0_0] : memref<16x128xf32, #tpu.memory_space<vmem>>, vector<16x128xf32>
    tpu.vector_store %arg4[%c0, %c0_0], %4 {strides = array<i32>} : memref<16x128xf32, #tpu.memory_space<vmem>>, vector<16x128xf32>,
    %c0_1 = arith.constant 0 : index
    %c0_2 = arith.constant 0 : index
    %6 = vector.load %arg1[%c0_1, %c0_2] : memref<16x20xf32, #tpu.memory_space<vmem>>, vector<16x20xf32>
    %c0_3 = arith.constant 0 : index
    %c0_4 = arith.constant 0 : index
    %7 = vector.load %arg4[%c0_3, %c0_4] : memref<16x128xf32, #tpu.memory_space<vmem>>, vector<16x20xf32>
    tpu.vector_store %arg4[%c0_3, %c0_4], %6 {strides = array<i32>} : memref<16x128xf32, #tpu.memory_space<vmem>>, vector<16x20xf32>,
    %c0_5 = arith.constant 0 : index
    %c0_6 = arith.constant 0 : index
    %8 = vector.load %arg4[%c0_5, %c0_6] : memref<16x128xf32, #tpu.memory_space<vmem>>, vector<16x128xf32>
    %c0_7 = arith.constant 0 : index
    %c0_8 = arith.constant 0 : index
    %c0_9 = arith.constant 0 : index
    %9 = vector.load %arg2[%c0_7, %c0_8, %c0_9] : memref<3x128x128xf32, #tpu.memory_space<vmem>>, vector<1x128x128xf32>
    %10 = vector.shape_cast %9 : vector<1x128x128xf32> to vector<128x128xf32>
    %cst = arith.constant dense<0.000000e+00> : vector<16x128xf32>
    %11 = tpu.matmul %8, %10, %cst {dimension_numbers = #tpu.dot_dimension_numbers<[1], [0], [0], [1], [0, 0, 1, 1], [], []>} : vector<16x128xf32>, vector<128x128xf32>, vector<16x128xf32> -> vector<16x128xf32>
    %cst_10 = arith.constant 2.000000e-01 : f32
    %12 = vector.broadcast %cst_10 : f32 to vector<16x128xf32>
    %13 = arith.mulf %12, %11 : vector<16x128xf32>
    %14 = arith.maximumf %11, %13 : vector<16x128xf32>
    %c1 = arith.constant 1 : index
    %c0_11 = arith.constant 0 : index
    %c0_12 = arith.constant 0 : index
    %15 = vector.load %arg2[%c1, %c0_11, %c0_12] : memref<3x128x128xf32, #tpu.memory_space<vmem>>, vector<1x128x128xf32>
    %16 = vector.shape_cast %15 : vector<1x128x128xf32> to vector<128x128xf32>
    %cst_13 = arith.constant dense<0.000000e+00> : vector<16x128xf32>
    %17 = tpu.matmul %14, %16, %cst_13 {dimension_numbers = #tpu.dot_dimension_numbers<[1], [0], [0], [1], [0, 0, 1, 1], [], []>} : vector<16x128xf32>, vector<128x128xf32>, vector<16x128xf32> -> vector<16x128xf32>
    %cst_14 = arith.constant 2.000000e-01 : f32
    %18 = vector.broadcast %cst_14 : f32 to vector<16x128xf32>
    %19 = arith.mulf %18, %17 : vector<16x128xf32>
    %20 = arith.maximumf %17, %19 : vector<16x128xf32>
    %c2 = arith.constant 2 : index
    %c0_15 = arith.constant 0 : index
    %c0_16 = arith.constant 0 : index
    %21 = vector.load %arg2[%c2, %c0_15, %c0_16] : memref<3x128x128xf32, #tpu.memory_space<vmem>>, vector<1x128x128xf32>
    %22 = vector.shape_cast %21 : vector<1x128x128xf32> to vector<128x128xf32>
    %cst_17 = arith.constant dense<0.000000e+00> : vector<16x128xf32>
    %23 = tpu.matmul %20, %22, %cst_17 {dimension_numbers = #tpu.dot_dimension_numbers<[1], [0], [0], [1], [0, 0, 1, 1], [], []>} : vector<16x128xf32>, vector<128x128xf32>, vector<16x128xf32> -> vector<16x128xf32>
    %c0_18 = arith.constant 0 : index
    %c0_19 = arith.constant 0 : index
    %24 = vector.load %arg3[%c0_18, %c0_19] : memref<16x128xf32, #tpu.memory_space<vmem>>, vector<16x128xf32>
    tpu.vector_store %arg3[%c0_18, %c0_19], %23 {strides = array<i32>} : memref<16x128xf32, #tpu.memory_space<vmem>>, vector<16x128xf32>,
    return
  }
  func.func @transform_0(%arg0: i32) -> (i32, i32) {
    %c0_i32 = arith.constant 0 : i32
    %c0_i32_0 = arith.constant 0 : i32
    return %arg0, %c0_i32 : i32, i32
  }
  func.func @transform_1(%arg0: i32) -> (i32, i32, i32) {
    %c0_i32 = arith.constant 0 : i32
    %c0_i32_0 = arith.constant 0 : i32
    %c0_i32_1 = arith.constant 0 : i32
    %c0_i32_2 = arith.constant 0 : i32
    return %c0_i32, %c0_i32_0, %c0_i32_1 : i32, i32, i32
  }
  func.func @transform_2(%arg0: i32) -> (i32, i32) {
    %c0_i32 = arith.constant 0 : i32
    %c0_i32_0 = arith.constant 0 : i32
    return %arg0, %c0_i32 : i32, i32
  }
}

</mosaic_0001>

<llo_original>
// kernel: pose_decoder_forward.1
$region0: #{pose_decoder_forward.1}
  #allocation0 [shape = 'u32[]', space=smem, size = 0x4, offset = 0x4, fixed_abs, tag = 'smem constant byte address 0x4 - core index']
  #allocation1 [shape = 'u32[72,128]{1,0:T(1,128)}', space=vmem, size = 0x9000, scoped, tag = 'internal scratch']
  #allocation2 [shape = 'f32[16,128]{1,0:T(8,128)}', space=vmem, size = 0x2000, scoped, tag = 'scratch operand']
  %s0 = inlined_call_operand.vmem [shape: f32[16,20], index: 0, kind: input, shape index: {}]
  %s1 = inlined_call_operand.hbm [shape: f32[3,128,128], index: 1, kind: input, shape index: {}]
  %s2 = inlined_call_operand.vmem [shape: f32[16,128], index: 2, kind: output, shape index: {}]
  %s3 = sld [smem:[#allocation0]]
  $region22: #{pose_decoder_forward.1} parent=0
    _
  %s5 = ssub.s32 1, %s3
  %s6 = scalar_select 0, %s5, %s3
  $region1: #{pose_decoder_forward.1} parent=0
    #allocation3 [shape = 'u8[196608]{0}', space=vmem, size = 0x30000, scoped, tag = 'input window, operand 1, single buffered']
    #allocation4 [shape = 's32[1]{0}', space=sflag, size = 0x4, scoped, tag = 'scoped memory for pose_decoder_forward.1']
    %7 = vsyncpa [#allocation4], 0
    // Predicated region
    $region2: #{pose_decoder_forward.1} parent=1 // pred_check
      _
    $region3: #{pose_decoder_forward.1} parent=1 // pred_check_branch
      %9 = sbr.rel (0) target = $region5
    $region4: #{pose_decoder_forward.1} parent=1 // pred_region
      _
    $region5: #{pose_decoder_forward.1} parent=1 // pred_fallthru
      _
    // Predicated region
    $region6: #{pose_decoder_forward.1} parent=1 // pred_check
      _
    $region7: #{pose_decoder_forward.1} parent=1 // pred_check_branch
      %11 = sbr.rel (0) target = $region9
    $region8: #{pose_decoder_forward.1} parent=1 // pred_region
      %13 = vsyncadd [#allocation4], 0
      %s14 = sshll.u32 %s1, 4
      %s15 = int_to_ptr.hbm [resolvable:$true] %s14
      %s16 = sshll.u32 [#allocation3], 4
      %s17 = int_to_ptr.vmem [resolvable:$true] %s16
      %22 = dma.hbm_to_vmem [thread:$0]  %s15, 6144, %s17, [#allocation4], 128, 128, 8
    $region9: #{pose_decoder_forward.1} parent=1 // pred_fallthru
      _
    // Predicated region
    $region10: #{pose_decoder_forward.1} parent=1 // pred_check
      _
    $region11: #{pose_decoder_forward.1} parent=1 // pred_check_branch
      %24 = sbr.rel (0) target = $region13
    $region12: #{pose_decoder_forward.1} parent=1 // pred_region
      %26 = dma.done [#allocation4], 6144
    $region13: #{pose_decoder_forward.1} parent=1 // pred_fallthru
      _
    %v27 = vlaneseq
    %v28 = vand.u32 %v27, 127
    %vm29 = vcmp.eq.s32.totalorder %v28, 20
    %v30 = vsel %vm29, 1, 0
    %v31 = vcvt.s32.f32 %v30
    %32 = vst [vmem:[#allocation2] sm:$0xff] %v31
    %33 = vst [vmem:[#allocation2 + $0x8] sm:$0xff] %v31
    %v34 = vld [vmem:[%s0] sm:$0xff]
    %v35 = vld [vmem:[%s0 + $0x8] sm:$0xff]
    %vm36 = vcmask 162816
    %37 = vst.msk [vmem:[#allocation2] sm:$0xff] %vm36, %v34
    %38 = vst.msk [vmem:[#allocation2 + $0x8] sm:$0xff] %vm36, %v35
    %v39 = vld [vmem:[#allocation2] sm:$0xff]
    %v40 = vld [vmem:[#allocation2 + $0x8] sm:$0xff]
    %v41 = vld [vmem:[#allocation3] sm:$0xff]
    %v42 = vld [vmem:[#allocation3 + $0x8] sm:$0xff]
    %v43 = vld [vmem:[#allocation3 + $0x10] sm:$0xff]
    %v44 = vld [vmem:[#allocation3 + $0x18] sm:$0xff]
    %v45 = vld [vmem:[#allocation3 + $0x20] sm:$0xff]
    %v46 = vld [vmem:[#allocation3 + $0x28] sm:$0xff]
    %v47 = vld [vmem:[#allocation3 + $0x30] sm:$0xff]
    %v48 = vld [vmem:[#allocation3 + $0x38] sm:$0xff]
    %v49 = vld [vmem:[#allocation3 + $0x40] sm:$0xff]
    %v50 = vld [vmem:[#allocation3 + $0x48] sm:$0xff]
    %v51 = vld [vmem:[#allocation3 + $0x50] sm:$0xff]
    %v52 = vld [vmem:[#allocation3 + $0x58] sm:$0xff]
    %v53 = vld [vmem:[#allocation3 + $0x60] sm:$0xff]
    %v54 = vld [vmem:[#allocation3 + $0x68] sm:$0xff]
    %v55 = vld [vmem:[#allocation3 + $0x70] sm:$0xff]
    %v56 = vld [vmem:[#allocation3 + $0x78] sm:$0xff]
    %57 = vmatpush.msra.mxu0 %v56
    %58 = vmatpush.msra.mxu0 %v55
    %59 = vmatpush.msra.mxu0 %v54
    %60 = vmatpush.msra.mxu0 %v53
    %61 = vmatpush.msra.mxu0 %v52
    %62 = vmatpush.msra.mxu0 %v51
    %63 = vmatpush.msra.mxu0 %v50
    %64 = vmatpush.msra.mxu0 %v49
    %65 = vmatpush.msra.mxu0 %v48
    %66 = vmatpush.msra.mxu0 %v47
    %67 = vmatpush.msra.mxu0 %v46
    %68 = vmatpush.msra.mxu0 %v45
    %69 = vmatpush.msra.mxu0 %v44
    %70 = vmatpush.msra.mxu0 %v43
    %71 = vmatpush.msra.mxu0 %v42
    %72 = vmatpush.msra.mxu0 %v41
    %73 = vmatmul.f32.gmra.mxu0 %v39
    %v74 = vpop.f32.mrf.mxu0
    %v75 = vadd.f32 0.0, %v74
    %76 = vmatmul.f32.gmra.mxu0 %v40
    %v77 = vpop.f32.mrf.mxu0
    %v78 = vadd.f32 0.0, %v77
    %79 = vdwg.mxu0
    %v80 = vmul.f32 %v75, 0.2
    %v81 = vmul.f32 %v78, 0.2
    %v82 = vmax.f32 %v75, %v80
    %v83 = vmax.f32 %v78, %v81
    %s84 = scalar_lea.vmem [#allocation3], 128
    %v85 = vld [vmem:[%s84] sm:$0xff]
    %v86 = vld [vmem:[%s84 + $0x8] sm:$0xff]
    %v87 = vld [vmem:[%s84 + $0x10] sm:$0xff]
    %v88 = vld [vmem:[%s84 + $0x18] sm:$0xff]
    %v89 = vld [vmem:[%s84 + $0x20] sm:$0xff]
    %v90 = vld [vmem:[%s84 + $0x28] sm:$0xff]
    %v91 = vld [vmem:[%s84 + $0x30] sm:$0xff]
    %v92 = vld [vmem:[%s84 + $0x38] sm:$0xff]
    %v93 = vld [vmem:[%s84 + $0x40] sm:$0xff]
    %v94 = vld [vmem:[%s84 + $0x48] sm:$0xff]
    %v95 = vld [vmem:[%s84 + $0x50] sm:$0xff]
    %v96 = vld [vmem:[%s84 + $0x58] sm:$0xff]
    %v97 = vld [vmem:[%s84 + $0x60] sm:$0xff]
    %v98 = vld [vmem:[%s84 + $0x68] sm:$0xff]
    %v99 = vld [vmem:[%s84 + $0x70] sm:$0xff]
    %v100 = vld [vmem:[%s84 + $0x78] sm:$0xff]
    %101 = vmatpush.msra.mxu0 %v100
    %102 = vmatpush.msra.mxu0 %v99
    %103 = vmatpush.msra.mxu0 %v98
    %104 = vmatpush.msra.mxu0 %v97
    %105 = vmatpush.msra.mxu0 %v96
    %106 = vmatpush.msra.mxu0 %v95
    %107 = vmatpush.msra.mxu0 %v94
    %108 = vmatpush.msra.mxu0 %v93
    %109 = vmatpush.msra.mxu0 %v92
    %110 = vmatpush.msra.mxu0 %v91
    %111 = vmatpush.msra.mxu0 %v90
    %112 = vmatpush.msra.mxu0 %v89
    %113 = vmatpush.msra.mxu0 %v88
    %114 = vmatpush.msra.mxu0 %v87
    %115 = vmatpush.msra.mxu0 %v86
    %116 = vmatpush.msra.mxu0 %v85
    %117 = vmatmul.f32.gmra.mxu0 %v82
    %v118 = vpop.f32.mrf.mxu0
    %v119 = vadd.f32 0.0, %v118
    %120 = vmatmul.f32.gmra.mxu0 %v83
    %v121 = vpop.f32.mrf.mxu0
    %v122 = vadd.f32 0.0, %v121
    %123 = vdwg.mxu0
    %v124 = vmul.f32 %v119, 0.2
    %v125 = vmul.f32 %v122, 0.2
    %v126 = vmax.f32 %v119, %v124
    %v127 = vmax.f32 %v122, %v125
    %s128 = scalar_lea.vmem [#allocation3], 256
    %v129 = vld [vmem:[%s128] sm:$0xff]
    %v130 = vld [vmem:[%s128 + $0x8] sm:$0xff]
    %v131 = vld [vmem:[%s128 + $0x10] sm:$0xff]
    %v132 = vld [vmem:[%s128 + $0x18] sm:$0xff]
    %v133 = vld [vmem:[%s128 + $0x20] sm:$0xff]
    %v134 = vld [vmem:[%s128 + $0x28] sm:$0xff]
    %v135 = vld [vmem:[%s128 + $0x30] sm:$0xff]
    %v136 = vld [vmem:[%s128 + $0x38] sm:$0xff]
    %v137 = vld [vmem:[%s128 + $0x40] sm:$0xff]
    %v138 = vld [vmem:[%s128 + $0x48] sm:$0xff]
    %v139 = vld [vmem:[%s128 + $0x50] sm:$0xff]
    %v140 = vld [vmem:[%s128 + $0x58] sm:$0xff]
    %v141 = vld [vmem:[%s128 + $0x60] sm:$0xff]
    %v142 = vld [vmem:[%s128 + $0x68] sm:$0xff]
    %v143 = vld [vmem:[%s128 + $0x70] sm:$0xff]
    %v144 = vld [vmem:[%s128 + $0x78] sm:$0xff]
    %145 = vmatpush.msra.mxu0 %v144
    %146 = vmatpush.msra.mxu0 %v143
    %147 = vmatpush.msra.mxu0 %v142
    %148 = vmatpush.msra.mxu0 %v141
    %149 = vmatpush.msra.mxu0 %v140
    %150 = vmatpush.msra.mxu0 %v139
    %151 = vmatpush.msra.mxu0 %v138
    %152 = vmatpush.msra.mxu0 %v137
    %153 = vmatpush.msra.mxu0 %v136
    %154 = vmatpush.msra.mxu0 %v135
    %155 = vmatpush.msra.mxu0 %v134
    %156 = vmatpush.msra.mxu0 %v133
    %157 = vmatpush.msra.mxu0 %v132
    %158 = vmatpush.msra.mxu0 %v131
    %159 = vmatpush.msra.mxu0 %v130
    %160 = vmatpush.msra.mxu0 %v129
    %161 = vmatmul.f32.gmra.mxu0 %v126
    %v162 = vpop.f32.mrf.mxu0
    %v163 = vadd.f32 0.0, %v162
    %164 = vmatmul.f32.gmra.mxu0 %v127
    %v165 = vpop.f32.mrf.mxu0
    %v166 = vadd.f32 0.0, %v165
    %167 = vdwg.mxu0
    %168 = vst [vmem:[%s2] sm:$0xff] %v163
    %169 = vst [vmem:[%s2 + $0x8] sm:$0xff] %v166
    // Predicated region
    $region14: #{pose_decoder_forward.1} parent=1 // pred_check
      _
    $region15: #{pose_decoder_forward.1} parent=1 // pred_check_branch
      %171 = sbr.rel (0) target = $region17
    $region16: #{pose_decoder_forward.1} parent=1 // pred_region
      _
    $region17: #{pose_decoder_forward.1} parent=1 // pred_fallthru
      _
    // Predicated region
    $region18: #{pose_decoder_forward.1} parent=1 // pred_check
      _
    $region19: #{pose_decoder_forward.1} parent=1 // pred_check_branch
      %173 = sbr.rel (0) target = $region21
    $region20: #{pose_decoder_forward.1} parent=1 // pred_region
      _
    $region21: #{pose_decoder_forward.1} parent=1 // pred_fallthru
      _
    %174 = vsyncpa [#allocation4], 1

</llo_original>
